<compile_context>
chip_gen: v7x
topology: tpu7x:2x2x1
jax: 0.10.0
libtpu: 0.0.40
codegen_flags: <defaults>
</compile_context>

<pallas_src>
import functools

import jax
import jax.numpy as jnp
from jax.experimental import pallas as pl
from jax.experimental.pallas import tpu as pltpu

FEATURES = 16          # `features` in the PyTorch module (undefined there; chosen here)
H1, H2, OUT = 5, 10, 1
DEFAULT_TILE_ROWS = 2048   # packed rows per grid step (= 32768 batch rows at pack=16)


def _default_pack():
    # 256-wide MXU generations (v6e / v7x) want K=256 packing (16 batch rows per
    # packed row); 128-wide MXUs (v4 / v5 family) use K=128 (8 rows).
    try:
        kind = jax.devices()[0].device_kind.lower()
    except Exception:
        return 8
    return 16 if ("v6" in kind or "v7" in kind or "7x" in kind) else 8


_DEFAULT_PACK = _default_pack()


def _mlp_kernel(x_ref, w1_ref, b1_ref, w2_ref, b2_ref, w3_ref, b3_ref, o_ref):
    # x block: (tile_rows, pack*F), lane-dense.  Matmuls run on bf16 operands
    # (native single-pass MXU) with f32 accumulation via preferred_element_type;
    # bias add + ReLU stay in f32.
    x = x_ref[...].astype(jnp.bfloat16)            # no-op when x streams as bf16
    h = jnp.dot(x, w1_ref[...], preferred_element_type=jnp.float32) + b1_ref[...]
    h = jnp.maximum(h, 0.0).astype(jnp.bfloat16)   # ReLU, back to bf16 for the MXU
    h = jnp.dot(h, w2_ref[...], preferred_element_type=jnp.float32) + b2_ref[...]
    h = jnp.maximum(h, 0.0).astype(jnp.bfloat16)
    y = jnp.dot(h, w3_ref[...], preferred_element_type=jnp.float32) + b3_ref[...]
    # Contiguous (tile, pack*OUT) store; compute is strictly row-wise so any
    # undefined rows of a partial last block never contaminate valid rows.
    o_ref[...] = y.astype(o_ref.dtype)


def _block_diag(w_t, pack):
    """(in, out) weight -> (pack*in, pack*out) block-diagonal replication."""
    fi, fo = w_t.shape
    eye = jnp.eye(pack, dtype=w_t.dtype)
    return (eye[:, None, :, None] * w_t[None, :, None, :]).reshape(pack * fi, pack * fo)


def _sublane(dtype):
    # Sublane packing granularity: 8 rows for 4-byte, 16 for 2-byte, 32 for 1-byte.
    return max(8, 32 // jnp.dtype(dtype).itemsize)


def _tail_forward(x_tail, w1, b1, w2, b2, w3, b3, out_dtype):
    """Plain-JAX path for the < pack tail rows; matches the kernel numerics."""
    def mm(a, w):
        return jnp.dot(a.astype(jnp.bfloat16), w.T.astype(jnp.bfloat16),
                       preferred_element_type=jnp.float32)
    h = jnp.maximum(mm(x_tail, w1) + b1, 0.0)
    h = jnp.maximum(mm(h, w2) + b2, 0.0)
    return (mm(h, w3) + b3).astype(out_dtype)


@functools.partial(jax.jit, static_argnames=("tile_rows", "pack", "out_dtype"))
def regressor_forward(x, w1, b1, w2, b2, w3, b3, *,
                      tile_rows=DEFAULT_TILE_ROWS, pack=None, out_dtype=None):
    """x: (B, F).  Weights in PyTorch nn.Linear layout: w (out, in), b (out,).

    Stream x as bf16 for best HBM throughput; accumulation is always f32 and
    the result is stored as `out_dtype` (default: x.dtype).
    """
    B, F = x.shape
    assert w1.shape[1] == F, "weight/input feature mismatch"
    h1, h2, n_out = w1.shape[0], w2.shape[0], w3.shape[0]
    if pack is None:
        pack = _DEFAULT_PACK
    if out_dtype is None:
        out_dtype = x.dtype
    out_dtype = jnp.dtype(out_dtype)

    # Zero-copy fallback: an 8-row packing still reshapes x for free when the
    # batch is only 8-aligned (avoids any extra HBM pass over x).
    if B % pack != 0 and B % 8 == 0 and (8 * F) % 128 == 0:
        pack = 8
    assert (pack * F) % 128 == 0, "packed row must be a whole number of 128-lane groups"

    B_main = (B // pack) * pack
    pieces = []

    if B_main > 0:
        # Prefix slice is a no-op when the batch is pack-aligned (common case);
        # truly unaligned batches pay one copy of the aligned prefix only, and
        # the < pack tail rows are handled by the tiny plain-JAX path below.
        x_main = x if B_main == B else x[:B_main]
        R = B_main // pack
        x2 = x_main.reshape(R, pack * F)           # free row-major reshape, lane-dense

        # Block-diagonal packed weights (bf16) / lane-tiled biases (f32): tiny,
        # constant index_maps -> resident in VMEM across all grid steps.
        w1p = _block_diag(w1.T, pack).astype(jnp.bfloat16)       # (pack*F , pack*H1 )
        w2p = _block_diag(w2.T, pack).astype(jnp.bfloat16)       # (pack*H1, pack*H2 )
        w3p = _block_diag(w3.T, pack).astype(jnp.bfloat16)       # (pack*H2, pack*OUT)
        b1p = jnp.tile(b1.reshape(1, -1).astype(jnp.float32), (1, pack))
        b2p = jnp.tile(b2.reshape(1, -1).astype(jnp.float32), (1, pack))
        b3p = jnp.tile(b3.reshape(1, -1).astype(jnp.float32), (1, pack))

        # Tile the packed-row (batch) axis.  Align tiles to the sublane packing
        # of the streamed dtypes and guarantee >= 2 grid steps whenever the
        # batch allows (megacore sharding on v7x + DMA/compute overlap).
        min_rows = max(_sublane(x.dtype), _sublane(out_dtype))
        if R <= min_rows:
            tile_rows = R                          # single full-extent block
        else:
            half = max(min_rows, (((R + 1) // 2) // min_rows) * min_rows)
            tile_rows = min(max(min_rows, (tile_rows // min_rows) * min_rows), half)
        grid = (pl.cdiv(R, tile_rows),)

        x_item = jnp.dtype(x.dtype).itemsize
        param_bytes = sum(int(a.size) * jnp.dtype(a.dtype).itemsize
                          for a in (w1p, b1p, w2p, b2p, w3p, b3p))
        cost = pl.CostEstimate(
            flops=2 * B_main * (F * h1 + h1 * h2 + h2 * n_out),
            transcendentals=0,
            bytes_accessed=(B_main * F * x_item
                            + B_main * n_out * out_dtype.itemsize + param_bytes),
        )

        def full(a):  # whole-array block, resident across grid steps
            return pl.BlockSpec(a.shape, lambda i: (0, 0))

        out2 = pl.pallas_call(
            _mlp_kernel,
            out_shape=jax.ShapeDtypeStruct((R, pack * n_out), out_dtype),
            grid_spec=pltpu.PrefetchScalarGridSpec(
                num_scalar_prefetch=0,
                grid=grid,
                in_specs=[
                    # x stream; pipeline_mode=pl.Buffered(3) is a possible small
                    # extra win on v7x -- keep default 2-deep unless measured.
                    pl.BlockSpec((tile_rows, pack * F), lambda i: (i, 0)),
                    full(w1p), full(b1p),
                    full(w2p), full(b2p),
                    full(w3p), full(b3p),
                ],
                out_specs=pl.BlockSpec((tile_rows, pack * n_out), lambda i: (i, 0)),
            ),
            compiler_params=pltpu.CompilerParams(
                # "parallel" batch axis -> megacore sharding on v7x.  Per-step
                # VMEM (~5 MiB bf16 / ~9 MiB f32 at the default tile) stays
                # under every generation's default scoped VMEM.
                dimension_semantics=("parallel",)),
            cost_estimate=cost,
        )(x2, w1p, b1p, w2p, b2p, w3p, b3p)

        # (R, pack*n_out) row-major == (B_main, n_out): free reshape.
        pieces.append(out2.reshape(B_main, n_out))

    if B_main < B:
        pieces.append(_tail_forward(x[B_main:], w1, b1, w2, b2, w3, b3, out_dtype))

    return pieces[0] if len(pieces) == 1 else jnp.concatenate(pieces, axis=0)


def init_params(key, features=FEATURES):
    """Deterministic init matching nn.Linear shapes: w (out, in), b (out,)."""
    ks = jax.random.split(key, 6)

    def linear(kw, kb, fan_in, fan_out):
        bound = 1.0 / (fan_in ** 0.5)
        w = jax.random.uniform(kw, (fan_out, fan_in), jnp.float32, -bound, bound)
        b = jax.random.uniform(kb, (fan_out,), jnp.float32, -bound, bound)
        return w, b

    w1, b1 = linear(ks[0], ks[1], features, H1)
    w2, b2 = linear(ks[2], ks[3], H1, H2)
    w3, b3 = linear(ks[4], ks[5], H2, OUT)
    return w1, b1, w2, b2, w3, b3


def reference_forward(x, w1, b1, w2, b2, w3, b3):
    hp = jax.lax.Precision.HIGHEST
    h = jnp.maximum(jnp.dot(x, w1.T, precision=hp) + b1, 0.0)
    h = jnp.maximum(jnp.dot(h, w2.T, precision=hp) + b2, 0.0)
    return jnp.dot(h, w3.T, precision=hp) + b3


if __name__ == "__main__":
    key = jax.random.PRNGKey(0)
    kx, kp = jax.random.split(key)
    params = init_params(kp, FEATURES)

    # 1) bf16 x stream (recommended default: halves HBM read traffic), aligned
    #    batch, small tile so the parallel grid has multiple steps.
    batch = 512
    x32 = jax.random.normal(kx, (batch, FEATURES), jnp.float32)
    xb = x32.astype(jnp.bfloat16)
    out1 = jax.block_until_ready(regressor_forward(xb, *params, tile_rows=16))
    ref1 = reference_forward(xb.astype(jnp.float32), *params)
    assert out1.shape == (batch, 1) and out1.dtype == jnp.bfloat16
    assert jnp.allclose(out1.astype(jnp.float32), ref1, atol=5e-2, rtol=5e-2)

    # 2) f32 x, batch not a multiple of 8/16: exercises the prefix-slice plus
    #    the tiny plain-JAX tail path (no full-array pad copy), default tile.
    x_odd = jax.random.normal(jax.random.PRNGKey(1), (203, FEATURES), jnp.float32)
    out2 = jax.block_until_ready(regressor_forward(x_odd, *params))
    ref2 = reference_forward(x_odd, *params)
    assert out2.shape == (203, 1) and out2.dtype == jnp.float32
    assert jnp.allclose(out2, ref2, atol=5e-2, rtol=5e-2)

    # 3) bf16 x stream with explicit f32 output (f32 accumulation kept on store).
    out3 = jax.block_until_ready(
        regressor_forward(xb, *params, out_dtype=jnp.float32))
    assert out3.shape == (batch, 1) and out3.dtype == jnp.float32
    assert jnp.allclose(out3, ref1, atol=5e-2, rtol=5e-2)

    print("KERNEL_OK")
</pallas_src>

<mosaic_0001>
module attributes {stable_mosaic.version = 11 : i64} {
  func.func @_mlp_kernel(%arg0: i32, %arg1: memref<16x128xbf16, #tpu.memory_space<vmem>>, %arg2: memref<128x40xbf16, #tpu.memory_space<vmem>>, %arg3: memref<1x40xf32, #tpu.memory_space<vmem>>, %arg4: memref<40x80xbf16, #tpu.memory_space<vmem>>, %arg5: memref<1x80xf32, #tpu.memory_space<vmem>>, %arg6: memref<80x8xbf16, #tpu.memory_space<vmem>>, %arg7: memref<1x8xf32, #tpu.memory_space<vmem>>, %arg8: memref<16x8xbf16, #tpu.memory_space<vmem>>) attributes {dimension_semantics = [#tpu.dimension_semantics<parallel>], iteration_bounds = array<i64: 4>, scalar_prefetch = 0 : i64, scratch_operands = 0 : i64, tpu.core_type = #tpu.core_type<tc>, window_params = [{transform_indices = @transform_0, window_bounds = array<i64: 16, 128>}, {pipeline_mode = #tpu.pipeline_mode<synchronous>, transform_indices = @transform_1, window_bounds = array<i64: 128, 40>}, {pipeline_mode = #tpu.pipeline_mode<synchronous>, transform_indices = @transform_2, window_bounds = array<i64: 1, 40>}, {pipeline_mode = #tpu.pipeline_mode<synchronous>, transform_indices = @transform_3, window_bounds = array<i64: 40, 80>}, {pipeline_mode = #tpu.pipeline_mode<synchronous>, transform_indices = @transform_4, window_bounds = array<i64: 1, 80>}, {pipeline_mode = #tpu.pipeline_mode<synchronous>, transform_indices = @transform_5, window_bounds = array<i64: 80, 8>}, {pipeline_mode = #tpu.pipeline_mode<synchronous>, transform_indices = @transform_6, window_bounds = array<i64: 1, 8>}, {transform_indices = @transform_7, window_bounds = array<i64: 16, 8>}]} {
    %c0 = arith.constant 0 : index
    %c0_0 = arith.constant 0 : index
    %0 = vector.load %arg1[%c0, %c0_0] : memref<16x128xbf16, #tpu.memory_space<vmem>>, vector<16x128xbf16>
    %c0_1 = arith.constant 0 : index
    %c0_2 = arith.constant 0 : index
    %1 = vector.load %arg2[%c0_1, %c0_2] : memref<128x40xbf16, #tpu.memory_space<vmem>>, vector<128x40xbf16>
    %cst = arith.constant dense<0.000000e+00> : vector<16x40xf32>
    %2 = tpu.matmul %0, %1, %cst {dimension_numbers = #tpu.dot_dimension_numbers<[1], [0], [0], [1], [0, 0, 1, 1], [], []>} : vector<16x128xbf16>, vector<128x40xbf16>, vector<16x40xf32> -> vector<16x40xf32>
    %c0_3 = arith.constant 0 : index
    %c0_4 = arith.constant 0 : index
    %3 = vector.load %arg3[%c0_3, %c0_4] : memref<1x40xf32, #tpu.memory_space<vmem>>, vector<1x40xf32>
    %4 = vector.broadcast %3 : vector<1x40xf32> to vector<16x40xf32>
    %5 = arith.addf %2, %4 : vector<16x40xf32>
    %cst_5 = arith.constant 0.000000e+00 : f32
    %6 = vector.broadcast %cst_5 : f32 to vector<16x40xf32>
    %7 = arith.maximumf %5, %6 : vector<16x40xf32>
    %8 = arith.truncf %7 : vector<16x40xf32> to vector<16x40xbf16>
    %c0_6 = arith.constant 0 : index
    %c0_7 = arith.constant 0 : index
    %9 = vector.load %arg4[%c0_6, %c0_7] : memref<40x80xbf16, #tpu.memory_space<vmem>>, vector<40x80xbf16>
    %cst_8 = arith.constant dense<0.000000e+00> : vector<16x80xf32>
    %10 = tpu.matmul %8, %9, %cst_8 {dimension_numbers = #tpu.dot_dimension_numbers<[1], [0], [0], [1], [0, 0, 1, 1], [], []>} : vector<16x40xbf16>, vector<40x80xbf16>, vector<16x80xf32> -> vector<16x80xf32>
    %c0_9 = arith.constant 0 : index
    %c0_10 = arith.constant 0 : index
    %11 = vector.load %arg5[%c0_9, %c0_10] : memref<1x80xf32, #tpu.memory_space<vmem>>, vector<1x80xf32>
    %12 = vector.broadcast %11 : vector<1x80xf32> to vector<16x80xf32>
    %13 = arith.addf %10, %12 : vector<16x80xf32>
    %cst_11 = arith.constant 0.000000e+00 : f32
    %14 = vector.broadcast %cst_11 : f32 to vector<16x80xf32>
    %15 = arith.maximumf %13, %14 : vector<16x80xf32>
    %16 = arith.truncf %15 : vector<16x80xf32> to vector<16x80xbf16>
    %c0_12 = arith.constant 0 : index
    %c0_13 = arith.constant 0 : index
    %17 = vector.load %arg6[%c0_12, %c0_13] : memref<80x8xbf16, #tpu.memory_space<vmem>>, vector<80x8xbf16>
    %cst_14 = arith.constant dense<0.000000e+00> : vector<16x8xf32>
    %18 = tpu.matmul %16, %17, %cst_14 {dimension_numbers = #tpu.dot_dimension_numbers<[1], [0], [0], [1], [0, 0, 1, 1], [], []>} : vector<16x80xbf16>, vector<80x8xbf16>, vector<16x8xf32> -> vector<16x8xf32>
    %c0_15 = arith.constant 0 : index
    %c0_16 = arith.constant 0 : index
    %19 = vector.load %arg7[%c0_15, %c0_16] : memref<1x8xf32, #tpu.memory_space<vmem>>, vector<1x8xf32>
    %20 = vector.broadcast %19 : vector<1x8xf32> to vector<16x8xf32>
    %21 = arith.addf %18, %20 : vector<16x8xf32>
    %22 = arith.truncf %21 : vector<16x8xf32> to vector<16x8xbf16>
    %c0_17 = arith.constant 0 : index
    %c0_18 = arith.constant 0 : index
    %23 = vector.load %arg8[%c0_17, %c0_18] : memref<16x8xbf16, #tpu.memory_space<vmem>>, vector<16x8xbf16>
    tpu.vector_store %arg8[%c0_17, %c0_18], %22 {strides = array<i32>} : memref<16x8xbf16, #tpu.memory_space<vmem>>, vector<16x8xbf16>,
    return
  }
  func.func @transform_0(%arg0: i32) -> (i32, i32) {
    %c0_i32 = arith.constant 0 : i32
    %c0_i32_0 = arith.constant 0 : i32
    return %arg0, %c0_i32 : i32, i32
  }
  func.func @transform_1(%arg0: i32) -> (i32, i32) {
    %c0_i32 = arith.constant 0 : i32
    %c0_i32_0 = arith.constant 0 : i32
    %c0_i32_1 = arith.constant 0 : i32
    return %c0_i32, %c0_i32_0 : i32, i32
  }
  func.func @transform_2(%arg0: i32) -> (i32, i32) {
    %c0_i32 = arith.constant 0 : i32
    %c0_i32_0 = arith.constant 0 : i32
    %c0_i32_1 = arith.constant 0 : i32
    return %c0_i32, %c0_i32_0 : i32, i32
  }
  func.func @transform_3(%arg0: i32) -> (i32, i32) {
    %c0_i32 = arith.constant 0 : i32
    %c0_i32_0 = arith.constant 0 : i32
    %c0_i32_1 = arith.constant 0 : i32
    return %c0_i32, %c0_i32_0 : i32, i32
  }
  func.func @transform_4(%arg0: i32) -> (i32, i32) {
    %c0_i32 = arith.constant 0 : i32
    %c0_i32_0 = arith.constant 0 : i32
    %c0_i32_1 = arith.constant 0 : i32
    return %c0_i32, %c0_i32_0 : i32, i32
  }
  func.func @transform_5(%arg0: i32) -> (i32, i32) {
    %c0_i32 = arith.constant 0 : i32
    %c0_i32_0 = arith.constant 0 : i32
    %c0_i32_1 = arith.constant 0 : i32
    return %c0_i32, %c0_i32_0 : i32, i32
  }
  func.func @transform_6(%arg0: i32) -> (i32, i32) {
    %c0_i32 = arith.constant 0 : i32
    %c0_i32_0 = arith.constant 0 : i32
    %c0_i32_1 = arith.constant 0 : i32
    return %c0_i32, %c0_i32_0 : i32, i32
  }
  func.func @transform_7(%arg0: i32) -> (i32, i32) {
    %c0_i32 = arith.constant 0 : i32
    %c0_i32_0 = arith.constant 0 : i32
    return %arg0, %c0_i32 : i32, i32
  }
}

</mosaic_0001>

<llo_original>
// kernel: regressor_forward.1
$region0: #{regressor_forward.1}
  #allocation0 [shape = 'u32[]', space=smem, size = 0x4, offset = 0x4, fixed_abs, tag = 'smem constant byte address 0x4 - core index']
  #allocation1 [shape = 'u32[144,128]{1,0:T(1,128)}', space=vmem, size = 0x12000, scoped, tag = 'internal scratch']
  %s0 = inlined_call_operand.vmem [shape: bf16[64,128], index: 0, kind: input, shape index: {}]
  %s1 = inlined_call_operand.vmem [shape: bf16[128,40], index: 1, kind: input, shape index: {}]
  %s2 = inlined_call_operand.vmem [shape: f32[1,40], index: 2, kind: input, shape index: {}]
  %s3 = inlined_call_operand.vmem [shape: bf16[40,80], index: 3, kind: input, shape index: {}]
  %s4 = inlined_call_operand.vmem [shape: f32[1,80], index: 4, kind: input, shape index: {}]
  %s5 = inlined_call_operand.vmem [shape: bf16[80,8], index: 5, kind: input, shape index: {}]
  %s6 = inlined_call_operand.vmem [shape: f32[1,8], index: 6, kind: input, shape index: {}]
  %s7 = inlined_call_operand.vmem [shape: bf16[64,8], index: 7, kind: output, shape index: {}]
  %s8 = sld [smem:[#allocation0]]
  $region61: #{regressor_forward.1} parent=0
    _
  %s10 = ssub.s32 1, %s8
  %s11 = scalar_select 0, %s10, %s8
  loop: start=0, step=1, limit=6
  $region2: #{regressor_forward.1} parent=0 // loop_pre_header
    _
  $region3: #{regressor_forward.1} parent=0 // loop_header
    %s13 = sphi 0, %s17
    %p14 = scmp.ge.s32.totalorder %s13, 6
    %s23 = sphi 0, %s25
    %s26 = sphi 0, %s23
    %s27 = sphi 0, %s26
    %s43 = sphi 0, %s27
    %s47 = sphi 0, %s47
    %s49 = sphi 0, %s47
    %s50 = sphi 0, %s49
    %s64 = sphi 0, %s50
    %s68 = sphi 0, %s68
    %s70 = sphi 0, %s68
    %s71 = sphi 0, %s70
    %s85 = sphi 0, %s71
    %s89 = sphi 0, %s89
    %s91 = sphi 0, %s89
    %s92 = sphi 0, %s91
    %s106 = sphi 0, %s92
    %s110 = sphi 0, %s110
    %s112 = sphi 0, %s110
    %s113 = sphi 0, %s112
    %s127 = sphi 0, %s113
    %s131 = sphi 0, %s131
    %s133 = sphi 0, %s131
    %s134 = sphi 0, %s133
    %s148 = sphi 0, %s134
    %s152 = sphi 0, %s152
    %s154 = sphi 0, %s152
    %s155 = sphi 0, %s154
    %s169 = sphi 0, %s155
    %s175 = sphi 0, %s177
    %s178 = sphi 0, %s175
    %s179 = sphi 0, %s178
    %s195 = sphi 0, %s179
  $region4: #{regressor_forward.1} parent=0 // loop_header_branch
    %16 = sbr.rel (%p14) target = $region8
  $region5: #{regressor_forward.1} parent=0 // loop_body
    %s18 = ssub.s32 %s13, 1
    %s19 = ssub.s32 %s13, 2
    %s20 = sadd.s32 %s13, 1
    %s21 = ssub.s32 %s13, %s20
    %p22 = scmp.eq.s32.totalorder %s21, 0
    %s24 = sadd.s32 %s23, 1
    %s25 = scalar_select %p22, %s23, %s24
    %p28 = pneg %p22
    %p29 = scmp.eq.s32.totalorder %s13, 3
    %p30 = por %p28, %p29
    %p31 = scmp.ne.s32.totalorder %s23, %s26
    %p32 = scmp.eq.s32.totalorder %s13, 0
    %p33 = por %p31, %p32
    %p34 = scmp.ne.s32.totalorder %s23, %s26
    %p35 = scmp.eq.s32.totalorder %s18, 3
    %p36 = por %p34, %p35
    %p37 = scmp.ne.s32.totalorder %s26, %s27
    %p38 = scmp.eq.s32.totalorder %s18, 0
    %p39 = por %p37, %p38
    %p40 = scmp.ne.s32.totalorder %s26, %s27
    %p41 = scmp.eq.s32.totalorder %s19, 3
    %p42 = por %p40, %p41
    %p44 = scmp.ne.s32.totalorder %s27, %s43
    %p45 = scmp.eq.s32.totalorder %s19, 0
    %p46 = por %p44, %p45
    %s48 = sadd.s32 %s47, 1
    %p51 = scmp.eq.s32.totalorder %s13, 3
    %p52 = scmp.ne.s32.totalorder %s47, %s49
    %p53 = scmp.eq.s32.totalorder %s13, 0
    %p54 = por %p52, %p53
    %p55 = scmp.ne.s32.totalorder %s47, %s49
    %p56 = scmp.eq.s32.totalorder %s18, 3
    %p57 = por %p55, %p56
    %p58 = scmp.ne.s32.totalorder %s49, %s50
    %p59 = scmp.eq.s32.totalorder %s18, 0
    %p60 = por %p58, %p59
    %p61 = scmp.ne.s32.totalorder %s49, %s50
    %p62 = scmp.eq.s32.totalorder %s19, 3
    %p63 = por %p61, %p62
    %p65 = scmp.ne.s32.totalorder %s50, %s64
    %p66 = scmp.eq.s32.totalorder %s19, 0
    %p67 = por %p65, %p66
    %s69 = sadd.s32 %s68, 1
    %p72 = scmp.eq.s32.totalorder %s13, 3
    %p73 = scmp.ne.s32.totalorder %s68, %s70
    %p74 = scmp.eq.s32.totalorder %s13, 0
    %p75 = por %p73, %p74
    %p76 = scmp.ne.s32.totalorder %s68, %s70
    %p77 = scmp.eq.s32.totalorder %s18, 3
    %p78 = por %p76, %p77
    %p79 = scmp.ne.s32.totalorder %s70, %s71
    %p80 = scmp.eq.s32.totalorder %s18, 0
    %p81 = por %p79, %p80
    %p82 = scmp.ne.s32.totalorder %s70, %s71
    %p83 = scmp.eq.s32.totalorder %s19, 3
    %p84 = por %p82, %p83
    %p86 = scmp.ne.s32.totalorder %s71, %s85
    %p87 = scmp.eq.s32.totalorder %s19, 0
    %p88 = por %p86, %p87
    %s90 = sadd.s32 %s89, 1
    %p93 = scmp.eq.s32.totalorder %s13, 3
    %p94 = scmp.ne.s32.totalorder %s89, %s91
    %p95 = scmp.eq.s32.totalorder %s13, 0
    %p96 = por %p94, %p95
    %p97 = scmp.ne.s32.totalorder %s89, %s91
    %p98 = scmp.eq.s32.totalorder %s18, 3
    %p99 = por %p97, %p98
    %p100 = scmp.ne.s32.totalorder %s91, %s92
    %p101 = scmp.eq.s32.totalorder %s18, 0
    %p102 = por %p100, %p101
    %p103 = scmp.ne.s32.totalorder %s91, %s92
    %p104 = scmp.eq.s32.totalorder %s19, 3
    %p105 = por %p103, %p104
    %p107 = scmp.ne.s32.totalorder %s92, %s106
    %p108 = scmp.eq.s32.totalorder %s19, 0
    %p109 = por %p107, %p108
    %s111 = sadd.s32 %s110, 1
    %p114 = scmp.eq.s32.totalorder %s13, 3
    %p115 = scmp.ne.s32.totalorder %s110, %s112
    %p116 = scmp.eq.s32.totalorder %s13, 0
    %p117 = por %p115, %p116
    %p118 = scmp.ne.s32.totalorder %s110, %s112
    %p119 = scmp.eq.s32.totalorder %s18, 3
    %p120 = por %p118, %p119
    %p121 = scmp.ne.s32.totalorder %s112, %s113
    %p122 = scmp.eq.s32.totalorder %s18, 0
    %p123 = por %p121, %p122
    %p124 = scmp.ne.s32.totalorder %s112, %s113
    %p125 = scmp.eq.s32.totalorder %s19, 3
    %p126 = por %p124, %p125
    %p128 = scmp.ne.s32.totalorder %s113, %s127
    %p129 = scmp.eq.s32.totalorder %s19, 0
    %p130 = por %p128, %p129
    %s132 = sadd.s32 %s131, 1
    %p135 = scmp.eq.s32.totalorder %s13, 3
    %p136 = scmp.ne.s32.totalorder %s131, %s133
    %p137 = scmp.eq.s32.totalorder %s13, 0
    %p138 = por %p136, %p137
    %p139 = scmp.ne.s32.totalorder %s131, %s133
    %p140 = scmp.eq.s32.totalorder %s18, 3
    %p141 = por %p139, %p140
    %p142 = scmp.ne.s32.totalorder %s133, %s134
    %p143 = scmp.eq.s32.totalorder %s18, 0
    %p144 = por %p142, %p143
    %p145 = scmp.ne.s32.totalorder %s133, %s134
    %p146 = scmp.eq.s32.totalorder %s19, 3
    %p147 = por %p145, %p146
    %p149 = scmp.ne.s32.totalorder %s134, %s148
    %p150 = scmp.eq.s32.totalorder %s19, 0
    %p151 = por %p149, %p150
    %s153 = sadd.s32 %s152, 1
    %p156 = scmp.eq.s32.totalorder %s13, 3
    %p157 = scmp.ne.s32.totalorder %s152, %s154
    %p158 = scmp.eq.s32.totalorder %s13, 0
    %p159 = por %p157, %p158
    %p160 = scmp.ne.s32.totalorder %s152, %s154
    %p161 = scmp.eq.s32.totalorder %s18, 3
    %p162 = por %p160, %p161
    %p163 = scmp.ne.s32.totalorder %s154, %s155
    %p164 = scmp.eq.s32.totalorder %s18, 0
    %p165 = por %p163, %p164
    %p166 = scmp.ne.s32.totalorder %s154, %s155
    %p167 = scmp.eq.s32.totalorder %s19, 3
    %p168 = por %p166, %p167
    %p170 = scmp.ne.s32.totalorder %s155, %s169
    %p171 = scmp.eq.s32.totalorder %s19, 0
    %p172 = por %p170, %p171
    %s173 = ssub.s32 %s13, %s20
    %p174 = scmp.eq.s32.totalorder %s173, 0
    %s176 = sadd.s32 %s175, 1
    %s177 = scalar_select %p174, %s175, %s176
    %p180 = pneg %p174
    %p181 = scmp.eq.s32.totalorder %s13, 3
    %p182 = por %p180, %p181
    %p183 = scmp.ne.s32.totalorder %s175, %s178
    %p184 = scmp.eq.s32.totalorder %s13, 0
    %p185 = por %p183, %p184
    %p186 = scmp.ne.s32.totalorder %s175, %s178
    %p187 = scmp.eq.s32.totalorder %s18, 3
    %p188 = por %p186, %p187
    %p189 = scmp.ne.s32.totalorder %s178, %s179
    %p190 = scmp.eq.s32.totalorder %s18, 0
    %p191 = por %p189, %p190
    %p192 = scmp.ne.s32.totalorder %s178, %s179
    %p193 = scmp.eq.s32.totalorder %s19, 3
    %p194 = por %p192, %p193
    %p196 = scmp.ne.s32.totalorder %s179, %s195
    %p197 = scmp.eq.s32.totalorder %s19, 0
    %p198 = por %p196, %p197
    %p199 = scmp.le.s32.totalorder 1, %s13
    %p200 = scmp.lt.s32.totalorder %s13, 5
    %p201 = pnand %p199, %p200
    %p202 = pneg %p201
    // Predicated region
    $region9: #{regressor_forward.1} parent=5 // pred_check
      _
    $region10: #{regressor_forward.1} parent=5 // pred_check_branch
      %204 = sbr.rel (%p201) target = $region12
    $region11: #{regressor_forward.1} parent=5 // pred_region
      %s205 = ssub.s32 %s13, 1
      // Predicated region
      $region13: #{regressor_forward.1} parent=11 // pred_check
        %p206 = pneg %p60
      $region14: #{regressor_forward.1} parent=11 // pred_check_branch
        %208 = sbr.rel (%p206) target = $region16
      $region15: #{regressor_forward.1} parent=11 // pred_region
        _
      $region16: #{regressor_forward.1} parent=11 // pred_fallthru
        _
      // Predicated region
      $region17: #{regressor_forward.1} parent=11 // pred_check
        %p209 = pneg %p81
      $region18: #{regressor_forward.1} parent=11 // pred_check_branch
        %211 = sbr.rel (%p209) target = $region20
      $region19: #{regressor_forward.1} parent=11 // pred_region
        _
      $region20: #{regressor_forward.1} parent=11 // pred_fallthru
        _
      // Predicated region
      $region21: #{regressor_forward.1} parent=11 // pred_check
        %p212 = pneg %p102
      $region22: #{regressor_forward.1} parent=11 // pred_check_branch
        %214 = sbr.rel (%p212) target = $region24
      $region23: #{regressor_forward.1} parent=11 // pred_region
        _
      $region24: #{regressor_forward.1} parent=11 // pred_fallthru
        _
      // Predicated region
      $region25: #{regressor_forward.1} parent=11 // pred_check
        %p215 = pneg %p123
      $region26: #{regressor_forward.1} parent=11 // pred_check_branch
        %217 = sbr.rel (%p215) target = $region28
      $region27: #{regressor_forward.1} parent=11 // pred_region
        _
      $region28: #{regressor_forward.1} parent=11 // pred_fallthru
        _
      // Predicated region
      $region29: #{regressor_forward.1} parent=11 // pred_check
        %p218 = pneg %p144
      $region30: #{regressor_forward.1} parent=11 // pred_check_branch
        %220 = sbr.rel (%p218) target = $region32
      $region31: #{regressor_forward.1} parent=11 // pred_region
        _
      $region32: #{regressor_forward.1} parent=11 // pred_fallthru
        _
      // Predicated region
      $region33: #{regressor_forward.1} parent=11 // pred_check
        %p221 = pneg %p165
      $region34: #{regressor_forward.1} parent=11 // pred_check_branch
        %223 = sbr.rel (%p221) target = $region36
      $region35: #{regressor_forward.1} parent=11 // pred_region
        _
      $region36: #{regressor_forward.1} parent=11 // pred_fallthru
        _
    $region12: #{regressor_forward.1} parent=5 // pred_fallthru
      _
    %p224 = scmp.lt.s32.totalorder %s13, 4
    // Predicated region
    $region37: #{regressor_forward.1} parent=5 // pred_check
      %p225 = pneg %p224
    $region38: #{regressor_forward.1} parent=5 // pred_check_branch
      %227 = sbr.rel (%p225) target = $region40
    $region39: #{regressor_forward.1} parent=5 // pred_region
      // Predicated region
      $region41: #{regressor_forward.1} parent=39 // pred_check
        %p228 = pneg %p33
      $region42: #{regressor_forward.1} parent=39 // pred_check_branch
        %230 = sbr.rel (%p228) target = $region44
      $region43: #{regressor_forward.1} parent=39 // pred_region
        %s231 = smul.u32 2, %s13
        %p232 = scmp.lt.s32.totalorder %s231, 7
        %s233 = scalar_select %p232, %s231, 7
        %s234 = smul.addr %s233, 4
        %s235 = scalar_lea.vmem %s0, %s234
        %s236 = smul.u32 2, %s13
      $region44: #{regressor_forward.1} parent=39 // pred_fallthru
        _
    $region40: #{regressor_forward.1} parent=5 // pred_fallthru
      _
    %p237 = scmp.le.s32.totalorder 1, %s13
    %p238 = scmp.lt.s32.totalorder %s13, 5
    %p239 = pnand %p237, %p238
    %p240 = pneg %p239
    // Predicated region
    $region45: #{regressor_forward.1} parent=5 // pred_check
      _
    $region46: #{regressor_forward.1} parent=5 // pred_check_branch
      %242 = sbr.rel (%p239) target = $region48
    $region47: #{regressor_forward.1} parent=5 // pred_region
      %s243 = ssub.s32 %s13, 1
      %s244 = smul.u32 2, %s18
      %p245 = scmp.lt.s32.totalorder %s244, 7
      %s246 = scalar_select %p245, %s244, 7
      %s247 = smul.addr %s246, 4
      %s248 = scalar_lea.vmem %s0, %s247
      %p249 = pneg %p39
      %p250 = pneg %p36
      %p251 = pneg %p60
      %p252 = pneg %p57
      %p253 = pneg %p81
      %p254 = pneg %p78
      %p255 = pneg %p102
      %p256 = pneg %p99
      %p257 = pneg %p123
      %p258 = pneg %p120
      %p259 = pneg %p144
      %p260 = pneg %p141
      %p261 = pneg %p165
      %p262 = pneg %p162
      %p263 = pneg %p191
      %p264 = pneg %p188
      %s265 = smul.u32 2, %s18
      %p266 = scmp.lt.s32.totalorder %s265, 7
      %s267 = scalar_select %p266, %s265, 7
      %s268 = smul.addr %s267, 4
      %s269 = scalar_lea.vmem %s7, %s268
      %s270 = smul.u32 2, %s18
      %p271 = scmp.lt.s32.totalorder %s270, 7
      %s272 = scalar_select %p271, %s270, 7
      %s273 = smul.addr %s272, 4
      %s274 = scalar_lea.vmem %s0, %s273
      %s275 = smul.u32 2, %s18
      %s276 = smul.u32 2, %s18
      %p277 = scmp.lt.s32.totalorder %s276, 7
      %s278 = scalar_select %p277, %s276, 7
      %s279 = smul.addr %s278, 4
      %s280 = scalar_lea.vmem %s7, %s279
      %s281 = smul.u32 2, %s18
      %v283 = vld [vmem:[%s274] sm:$0xf]
      %v284 = vld [vmem:[%s274 + $0x4] sm:$0xf]
      %v285 = vld [vmem:[%s1] sm:$0xf]
      %v286 = vld [vmem:[%s1 + $0x4] sm:$0xf]
      %v287 = vld [vmem:[%s1 + $0x8] sm:$0xf]
      %v288 = vld [vmem:[%s1 + $0xc] sm:$0xf]
      %v289 = vld [vmem:[%s1 + $0x10] sm:$0xf]
      %v290 = vld [vmem:[%s1 + $0x14] sm:$0xf]
      %v291 = vld [vmem:[%s1 + $0x18] sm:$0xf]
      %v292 = vld [vmem:[%s1 + $0x1c] sm:$0xf]
      %v293 = vld [vmem:[%s1 + $0x20] sm:$0xf]
      %v294 = vld [vmem:[%s1 + $0x24] sm:$0xf]
      %v295 = vld [vmem:[%s1 + $0x28] sm:$0xf]
      %v296 = vld [vmem:[%s1 + $0x2c] sm:$0xf]
      %v297 = vld [vmem:[%s1 + $0x30] sm:$0xf]
      %v298 = vld [vmem:[%s1 + $0x34] sm:$0xf]
      %v299 = vld [vmem:[%s1 + $0x38] sm:$0xf]
      %v300 = vld [vmem:[%s1 + $0x3c] sm:$0xf]
      %v301 = vld [vmem:[%s2] sm:$0x1]
      %v303 = vlaneseq
      %v304 = vshrl.u32 %v303, 7
      %v305 = vsub.s32 0, %v304
      %v306 = vrot.slane %v301, %v305
      %v310 = vunpack.c.l.b16 %v283
      %v311 = vunpack.c.l.b16 %v284
      %v312 = vpack.c.b16 %v311, %v310
      %v330 = vunpack.c.l.b16 %v285
      %v331 = vunpack.c.l.b16 %v286
      %v332 = vunpack.c.l.b16 %v287
      %v333 = vunpack.c.l.b16 %v288
      %v334 = vunpack.c.l.b16 %v289
      %v335 = vunpack.c.l.b16 %v290
      %v336 = vunpack.c.l.b16 %v291
      %v337 = vunpack.c.l.b16 %v292
      %v338 = vunpack.c.l.b16 %v293
      %v339 = vunpack.c.l.b16 %v294
      %v340 = vunpack.c.l.b16 %v295
      %v341 = vunpack.c.l.b16 %v296
      %v342 = vunpack.c.l.b16 %v297
      %v343 = vunpack.c.l.b16 %v298
      %v344 = vunpack.c.l.b16 %v299
      %v345 = vunpack.c.l.b16 %v300
      %v346 = vpack.c.b16 %v331, %v330
      %v347 = vpack.c.b16 %v333, %v332
      %v348 = vpack.c.b16 %v335, %v334
      %v349 = vpack.c.b16 %v337, %v336
      %v350 = vpack.c.b16 %v339, %v338
      %v351 = vpack.c.b16 %v341, %v340
      %v352 = vpack.c.b16 %v343, %v342
      %v353 = vpack.c.b16 %v345, %v344
      %362 = vmatprep.subr.bf16.mxu0 0
      %363 = vmatpush1.bf16.msra.mxu0 %v346
      %364 = vmatprep.subr.bf16.mxu0 0
      %365 = vmatpush1.bf16.msra.mxu0 %v347
      %366 = vmatprep.subr.bf16.mxu0 0
      %367 = vmatpush1.bf16.msra.mxu0 %v348
      %368 = vmatprep.subr.bf16.mxu0 0
      %369 = vmatpush1.bf16.msra.mxu0 %v349
      %370 = vmatprep.subr.bf16.mxu0 0
      %371 = vmatpush1.bf16.msra.mxu0 %v350
      %372 = vmatprep.subr.bf16.mxu0 0
      %373 = vmatpush1.bf16.msra.mxu0 %v351
      %374 = vmatprep.subr.bf16.mxu0 0
      %375 = vmatpush1.bf16.msra.mxu0 %v352
      %376 = vmatprep.subr.bf16.mxu0 0
      %377 = vmatpush1.bf16.msra.mxu0 %v353
      %378 = vmatprep.subr.bf16.mxu0 0
      %379 = vmatpush1.bf16.msra.mxu0 0
      %380 = vmatprep.subr.bf16.mxu0 0
      %381 = vmatpush1.bf16.msra.mxu0 0
      %382 = vmatprep.subr.bf16.mxu0 0
      %383 = vmatpush1.bf16.msra.mxu0 0
      %384 = vmatprep.subr.bf16.mxu0 0
      %385 = vmatpush1.bf16.msra.mxu0 0
      %386 = vmatprep.subr.bf16.mxu0 0
      %387 = vmatpush1.bf16.msra.mxu0 0
      %388 = vmatprep.subr.bf16.mxu0 0
      %389 = vmatpush1.bf16.msra.mxu0 0
      %390 = vmatprep.subr.bf16.mxu0 0
      %391 = vmatpush1.bf16.msra.mxu0 0
      %392 = vmatprep.subr.bf16.mxu0 0
      %393 = vmatpush1.bf16.msra.mxu0 0
      %394 = vmatprep.mubr.bf16.mxu0 0
      %395 = vmatmul.mubr.bf16.gmra.mrb[0].mxu0 %v312
      %v396 = vpop.f32.mrb[0].mxu0
      %v397 = vadd.f32 %v306, %v396
      %v398 = vpop.f32.mrb[0].mxu0
      %v399 = vpop.f32.mrb[0].mxu0
      %v400 = vadd.f32 %v306, %v399
      %v401 = vpop.f32.mrb[0].mxu0
      %402 = vdwg.mxu0
      %v403 = vmax.f32 %v397, 0.0
      %v404 = vmax.f32 %v400, 0.0
      %v405 = vpack.c.bf16 %v404, %v403
      %v406 = vld [vmem:[%s3] sm:$0xf]
      %v407 = vld [vmem:[%s3 + $0x4] sm:$0xf]
      %v408 = vld [vmem:[%s3 + $0x8] sm:$0xf]
      %v409 = vld [vmem:[%s3 + $0xc] sm:$0xf]
      %v410 = vld [vmem:[%s3 + $0x10] sm:$0xf]
      %v411 = vld [vmem:[%s4] sm:$0x1]
      %v413 = vlaneseq
      %v414 = vshrl.u32 %v413, 7
      %v415 = vsub.s32 0, %v414
      %v416 = vrot.slane %v411, %v415
      %v423 = vunpack.c.l.b16 %v406
      %v424 = vunpack.c.l.b16 %v407
      %v425 = vunpack.c.l.b16 %v408
      %v426 = vunpack.c.l.b16 %v409
      %v427 = vunpack.c.l.b16 %v410
      %v428 = vpack.c.b16 %v424, %v423
      %v429 = vpack.c.b16 %v426, %v425
      %v430 = vpack.c.b16 %v427, %v427
      %vm433 = vcmask 326656
      %v435 = vsel %vm433, %v405, 0
      %vm437 = vcmask 1043456
      %v439 = vsel %vm437, %v430, 0
      %441 = vmatprep.subr.bf16.mxu0 0
      %442 = vmatpush1.bf16.msra.mxu0 %v428
      %443 = vmatprep.subr.bf16.mxu0 0
      %444 = vmatpush1.bf16.msra.mxu0 %v429
      %445 = vmatprep.subr.bf16.mxu0 0
      %446 = vmatpush1.bf16.msra.mxu0 %v439
      %447 = vmatprep.subr.bf16.mxu0 0
      %448 = vmatpush1.bf16.msra.mxu0 0
      %449 = vmatprep.subr.bf16.mxu0 0
      %450 = vmatpush1.bf16.msra.mxu0 0
      %451 = vmatprep.subr.bf16.mxu0 0
      %452 = vmatpush1.bf16.msra.mxu0 0
      %453 = vmatprep.subr.bf16.mxu0 0
      %454 = vmatpush1.bf16.msra.mxu0 0
      %455 = vmatprep.subr.bf16.mxu0 0
      %456 = vmatpush1.bf16.msra.mxu0 0
      %457 = vmatprep.subr.bf16.mxu0 0
      %458 = vmatpush1.bf16.msra.mxu0 0
      %459 = vmatprep.subr.bf16.mxu0 0
      %460 = vmatpush1.bf16.msra.mxu0 0
      %461 = vmatprep.subr.bf16.mxu0 0
      %462 = vmatpush1.bf16.msra.mxu0 0
      %463 = vmatprep.subr.bf16.mxu0 0
      %464 = vmatpush1.bf16.msra.mxu0 0
      %465 = vmatprep.subr.bf16.mxu0 0
      %466 = vmatpush1.bf16.msra.mxu0 0
      %467 = vmatprep.subr.bf16.mxu0 0
      %468 = vmatpush1.bf16.msra.mxu0 0
      %469 = vmatprep.subr.bf16.mxu0 0
      %470 = vmatpush1.bf16.msra.mxu0 0
      %471 = vmatprep.subr.bf16.mxu0 0
      %472 = vmatpush1.bf16.msra.mxu0 0
      %473 = vmatprep.mubr.bf16.mxu0 0
      %474 = vmatmul.mubr.bf16.gmra.mrb[0].mxu0 %v435
      %v475 = vpop.f32.mrb[0].mxu0
      %v476 = vadd.f32 %v416, %v475
      %v477 = vpop.f32.mrb[0].mxu0
      %v478 = vpop.f32.mrb[0].mxu0
      %v479 = vadd.f32 %v416, %v478
      %v480 = vpop.f32.mrb[0].mxu0
      %481 = vdwg.mxu0
      %v482 = vmax.f32 %v476, 0.0
      %v483 = vmax.f32 %v479, 0.0
      %v484 = vpack.c.bf16 %v483, %v482
      %v485 = vld [vmem:[%s5] sm:$0xf]
      %v486 = vld [vmem:[%s5 + $0x4] sm:$0xf]
      %v487 = vld [vmem:[%s5 + $0x8] sm:$0xf]
      %v488 = vld [vmem:[%s5 + $0xc] sm:$0xf]
      %v489 = vld [vmem:[%s5 + $0x10] sm:$0xf]
      %v490 = vld [vmem:[%s5 + $0x14] sm:$0xf]
      %v491 = vld [vmem:[%s5 + $0x18] sm:$0xf]
      %v492 = vld [vmem:[%s5 + $0x1c] sm:$0xf]
      %v493 = vld [vmem:[%s5 + $0x20] sm:$0xf]
      %v494 = vld [vmem:[%s5 + $0x24] sm:$0xf]
      %v495 = vld [vmem:[%s6] sm:$0x1]
      %v497 = vlaneseq
      %v498 = vshrl.u32 %v497, 7
      %v499 = vsub.s32 0, %v498
      %v500 = vrot.slane %v495, %v499
      %v512 = vunpack.c.l.b16 %v485
      %v513 = vunpack.c.l.b16 %v486
      %v514 = vunpack.c.l.b16 %v487
      %v515 = vunpack.c.l.b16 %v488
      %v516 = vunpack.c.l.b16 %v489
      %v517 = vunpack.c.l.b16 %v490
      %v518 = vunpack.c.l.b16 %v491
      %v519 = vunpack.c.l.b16 %v492
      %v520 = vunpack.c.l.b16 %v493
      %v521 = vunpack.c.l.b16 %v494
      %v522 = vpack.c.b16 %v513, %v512
      %v523 = vpack.c.b16 %v515, %v514
      %v524 = vpack.c.b16 %v517, %v516
      %v525 = vpack.c.b16 %v519, %v518
      %v526 = vpack.c.b16 %v521, %v520
      %vm532 = vcmask 654336
      %v534 = vsel %vm532, %v484, 0
      %536 = vmatprep.subr.bf16.mxu0 0
      %537 = vmatpush1.bf16.msra.mxu0 %v522
      %538 = vmatprep.subr.bf16.mxu0 0
      %539 = vmatpush1.bf16.msra.mxu0 %v523
      %540 = vmatprep.subr.bf16.mxu0 0
      %541 = vmatpush1.bf16.msra.mxu0 %v524
      %542 = vmatprep.subr.bf16.mxu0 0
      %543 = vmatpush1.bf16.msra.mxu0 %v525
      %544 = vmatprep.subr.bf16.mxu0 0
      %545 = vmatpush1.bf16.msra.mxu0 %v526
      %546 = vmatprep.subr.bf16.mxu0 0
      %547 = vmatpush1.bf16.msra.mxu0 0
      %548 = vmatprep.subr.bf16.mxu0 0
      %549 = vmatpush1.bf16.msra.mxu0 0
      %550 = vmatprep.subr.bf16.mxu0 0
      %551 = vmatpush1.bf16.msra.mxu0 0
      %552 = vmatprep.subr.bf16.mxu0 0
      %553 = vmatpush1.bf16.msra.mxu0 0
      %554 = vmatprep.subr.bf16.mxu0 0
      %555 = vmatpush1.bf16.msra.mxu0 0
      %556 = vmatprep.subr.bf16.mxu0 0
      %557 = vmatpush1.bf16.msra.mxu0 0
      %558 = vmatprep.subr.bf16.mxu0 0
      %559 = vmatpush1.bf16.msra.mxu0 0
      %560 = vmatprep.subr.bf16.mxu0 0
      %561 = vmatpush1.bf16.msra.mxu0 0
      %562 = vmatprep.subr.bf16.mxu0 0
      %563 = vmatpush1.bf16.msra.mxu0 0
      %564 = vmatprep.subr.bf16.mxu0 0
      %565 = vmatpush1.bf16.msra.mxu0 0
      %566 = vmatprep.subr.bf16.mxu0 0
      %567 = vmatpush1.bf16.msra.mxu0 0
      %568 = vmatprep.mubr.bf16.mxu0 0
      %569 = vmatmul.mubr.bf16.gmra.mrb[0].mxu0 %v534
      %v570 = vpop.f32.mrb[0].mxu0
      %v571 = vadd.f32 %v500, %v570
      %v572 = vpop.f32.mrb[0].mxu0
      %v573 = vpop.f32.mrb[0].mxu0
      %v574 = vadd.f32 %v500, %v573
      %v575 = vpop.f32.mrb[0].mxu0
      %576 = vdwg.mxu0
      %v577 = vpack.c.bf16 %v574, %v571
      %v579 = vunpack.c.l.b16 %v577
      %v580 = vunpack.c.h.b16 %v577
      %v581 = vpack.c.b16 %v579, %v579
      %v582 = vpack.c.b16 %v580, %v580
      %vm585 = vcmask 60416
      %586 = vst.msk [vmem:[%s280] sm:$0xf] %vm585, %v581
      %587 = vst.msk [vmem:[%s280 + $0x4] sm:$0xf] %vm585, %v582
      %s588 = smul.u32 2, %s18
      %p589 = scmp.lt.s32.totalorder %s588, 7
      %s590 = scalar_select %p589, %s588, 7
      %s591 = smul.addr %s590, 4
      %s592 = scalar_lea.vmem %s7, %s591
      // Predicated region
      $region49: #{regressor_forward.1} parent=47 // pred_check
        %p593 = pneg %p188
      $region50: #{regressor_forward.1} parent=47 // pred_check_branch
        %595 = sbr.rel (%p593) target = $region52
      $region51: #{regressor_forward.1} parent=47 // pred_region
        %s596 = smul.u32 2, %s18
      $region52: #{regressor_forward.1} parent=47 // pred_fallthru
        _
    $region48: #{regressor_forward.1} parent=5 // pred_fallthru
      _
    %p597 = scmp.le.s32.totalorder 2, %s13
    // Predicated region
    $region53: #{regressor_forward.1} parent=5 // pred_check
      %p598 = pneg %p597
    $region54: #{regressor_forward.1} parent=5 // pred_check_branch
      %600 = sbr.rel (%p598) target = $region56
    $region55: #{regressor_forward.1} parent=5 // pred_region
      %s601 = ssub.s32 %s13, 2
      // Predicated region
      $region57: #{regressor_forward.1} parent=55 // pred_check
        %p602 = pneg %p194
      $region58: #{regressor_forward.1} parent=55 // pred_check_branch
        %604 = sbr.rel (%p602) target = $region60
      $region59: #{regressor_forward.1} parent=55 // pred_region
        %s605 = smul.u32 2, %s19
        %p606 = scmp.lt.s32.totalorder %s605, 7
        %s607 = scalar_select %p606, %s605, 7
        %s608 = smul.addr %s607, 4
        %s609 = scalar_lea.vmem %s7, %s608
      $region60: #{regressor_forward.1} parent=55 // pred_fallthru
        _
    $region56: #{regressor_forward.1} parent=5 // pred_fallthru
      _
  $region6: #{regressor_forward.1} parent=0 // loop_footer
    %s17 = sadd.s32 1, %s13
  $region7: #{regressor_forward.1} parent=0 // loop_footer_branch
    %12 = sbr.rel target = $region3
  $region8: #{regressor_forward.1} parent=0 // loop_exit
    _

</llo_original>
